<compile_context>
chip_gen: v5e
topology: v5e:2x2
jax: 0.10.0
libtpu: 0.0.40
codegen_flags: <defaults>
</compile_context>

<pallas_src>
import functools

import jax
import jax.numpy as jnp
from jax.experimental import pallas as pl
from jax.experimental.pallas import tpu as pltpu


def bandit_forward_kernel(x_ref, w1_ref, b1_ref, w2_ref, b2_ref, o_ref,
                          *, apply_softmax: bool):
    """One batch tile of the two-layer MLP. MXU in bf16, VPU/EUP math in f32."""
    # Cast to bf16 for the MXU inside the kernel (v5e has no bf16 VPU path, so
    # bias add / ReLU / softmax stay in f32).
    x = x_ref[...].astype(jnp.bfloat16)                                # [TB, D]
    h = jnp.dot(x, w1_ref[...], preferred_element_type=jnp.float32)    # [TB, H]
    h = jnp.maximum(h + b1_ref[...], 0.0)
    logits = jnp.dot(h.astype(jnp.bfloat16), w2_ref[...],
                     preferred_element_type=jnp.float32)               # [TB, A]
    logits = logits + b2_ref[...]
    if apply_softmax:
        # Numerically-stable softmax over the (true-width) action axis.
        m = jnp.max(logits, axis=1, keepdims=True)
        e = jnp.exp(logits - m)
        logits = e / jnp.sum(e, axis=1, keepdims=True)   # exact normalization
    o_ref[...] = logits.astype(o_ref.dtype)


def bandit_forward(x, w1, b1, w2, b2, *, algorithm="Greedy", block_batch=8192):
    """BanditModel.forward.

    x:  [batch, dim]        (native dtype; cast to bf16 inside the kernel)
    w1: [dim, 32]           fc1.weight.T
    b1: [32] or [1, 32]     fc1.bias
    w2: [32, n_actions]     fc2.weight.T
    b2: [n_actions] or [1, n_actions]  fc2.bias
    returns [batch, n_actions] float32
    """
    batch, dim = x.shape
    hidden, n_actions = w2.shape
    apply_softmax = (algorithm == "PPO")

    # --- batch tiling ---------------------------------------------------------
    # Big tiles to amortize per-grid-step overhead, but capped at ceil(batch/2)
    # when the batch allows it so grid >= 2 and both v7x TensorCores get work.
    tb = min(block_batch, batch)
    if batch >= 16:
        tb = min(tb, pl.cdiv(batch, 2))
    if tb < batch:
        tb = ((tb + 7) // 8) * 8          # sublane-aligned tiles; last block ragged
        if tb >= batch:
            tb = batch
    grid = (pl.cdiv(batch, tb),)

    # --- tiny resident operands (weights/biases; resident via constant index_map)
    w1b = w1.astype(jnp.bfloat16)
    w2b = w2.astype(jnp.bfloat16)
    b1f = jnp.reshape(b1, (1, hidden)).astype(jnp.float32)
    b2f = jnp.reshape(b2, (1, n_actions)).astype(jnp.float32)

    # --- cost hint for XLA scheduling around this short mem-bound call --------
    flops = 2 * batch * (dim * hidden + hidden * n_actions)
    transcendentals = batch * n_actions if apply_softmax else 0
    bytes_accessed = (batch * dim * x.dtype.itemsize        # x read
                      + dim * hidden * 2 + hidden * 4        # W1 + b1
                      + hidden * n_actions * 2 + n_actions * 4  # W2 + b2
                      + batch * n_actions * 4)                # output write
    cost = pl.CostEstimate(flops=flops, transcendentals=transcendentals,
                           bytes_accessed=bytes_accessed)

    kernel = functools.partial(bandit_forward_kernel, apply_softmax=apply_softmax)

    out = pl.pallas_call(
        kernel,
        out_shape=jax.ShapeDtypeStruct((batch, n_actions), jnp.float32),
        grid=grid,
        in_specs=[
            pl.BlockSpec((tb, dim), lambda i: (i, 0)),            # x tile, pipelined
            pl.BlockSpec((dim, hidden), lambda i: (0, 0)),        # W1 (resident)
            pl.BlockSpec((1, hidden), lambda i: (0, 0)),          # b1 (resident)
            pl.BlockSpec((hidden, n_actions), lambda i: (0, 0)),  # W2 (resident, full dims)
            pl.BlockSpec((1, n_actions), lambda i: (0, 0)),       # b2 (resident, full dims)
        ],
        out_specs=pl.BlockSpec((tb, n_actions), lambda i: (i, 0)),  # true-width output
        compiler_params=pltpu.CompilerParams(
            dimension_semantics=("parallel",),
        ),
        cost_estimate=cost,
    )(x, w1b, b1f, w2b, b2f)

    return out


def init_params(key, dim, hidden, n_actions):
    """Deterministic init mimicking nn.Linear (uniform +/- 1/sqrt(fan_in))."""
    k1, k2, k3, k4 = jax.random.split(key, 4)
    lim1 = 1.0 / jnp.sqrt(jnp.float32(dim))
    lim2 = 1.0 / jnp.sqrt(jnp.float32(hidden))
    w1 = jax.random.uniform(k1, (dim, hidden), jnp.float32, -lim1, lim1)
    b1 = jax.random.uniform(k2, (hidden,), jnp.float32, -lim1, lim1)
    w2 = jax.random.uniform(k3, (hidden, n_actions), jnp.float32, -lim2, lim2)
    b2 = jax.random.uniform(k4, (n_actions,), jnp.float32, -lim2, lim2)
    return w1, b1, w2, b2


def reference_forward(x, w1, b1, w2, b2, *, algorithm="Greedy"):
    """Pure-JAX reference mirroring the kernel's bf16-operand / f32-acc math."""
    xb = x.astype(jnp.bfloat16)
    h = jnp.dot(xb, w1.astype(jnp.bfloat16),
                preferred_element_type=jnp.float32) + b1[None, :]
    h = jnp.maximum(h, 0.0)
    logits = jnp.dot(h.astype(jnp.bfloat16), w2.astype(jnp.bfloat16),
                     preferred_element_type=jnp.float32) + b2[None, :]
    if algorithm == "PPO":
        logits = jax.nn.softmax(logits, axis=1)
    return logits


if __name__ == "__main__":
    # Shapes implied by the module: dim=16 features, hidden=32, n_actions=4.
    dim, hidden, n_actions = 16, 32, 4

    key = jax.random.PRNGKey(0)
    kx, kp, kx2 = jax.random.split(key, 3)
    w1, b1, w2, b2 = init_params(kp, dim, hidden, n_actions)

    # --- small batch (single grid step, full-dim batch block) -----------------
    batch = 8
    x = jax.random.normal(kx, (batch, dim), jnp.float32)

    out = jax.block_until_ready(bandit_forward(x, w1, b1, w2, b2, algorithm="Greedy"))
    ref = reference_forward(x, w1, b1, w2, b2, algorithm="Greedy")
    assert out.shape == (batch, n_actions)
    assert jnp.allclose(out, ref, atol=1e-3, rtol=1e-3), "non-PPO mismatch"

    out_ppo = jax.block_until_ready(bandit_forward(x, w1, b1, w2, b2, algorithm="PPO"))
    ref_ppo = reference_forward(x, w1, b1, w2, b2, algorithm="PPO")
    assert jnp.allclose(out_ppo, ref_ppo, atol=5e-3, rtol=5e-3), "PPO mismatch"
    assert jnp.allclose(out_ppo.sum(axis=1), 1.0, atol=1e-5), "PPO rows not normalized"

    # --- larger batch exercising grid>=2 and the ragged final block -----------
    batch2 = 300
    x2 = jax.random.normal(kx2, (batch2, dim), jnp.float32)
    out2 = jax.block_until_ready(bandit_forward(x2, w1, b1, w2, b2, algorithm="PPO"))
    ref2 = reference_forward(x2, w1, b1, w2, b2, algorithm="PPO")
    assert out2.shape == (batch2, n_actions)
    assert jnp.allclose(out2, ref2, atol=5e-3, rtol=5e-3), "gridded PPO mismatch"

    # TODO(synk): act()/update_batch() (argmax-scatter policies, Adam training
    # loop) are control-heavy host-side logic; only forward() is kernelized.

    print("KERNEL_OK")
</pallas_src>

<mosaic_0001>
module attributes {stable_mosaic.version = 11 : i64} {
  func.func @bandit_forward_kernel(%arg0: i32, %arg1: memref<8x16xf32, #tpu.memory_space<vmem>>, %arg2: memref<16x32xbf16, #tpu.memory_space<vmem>>, %arg3: memref<1x32xf32, #tpu.memory_space<vmem>>, %arg4: memref<32x4xbf16, #tpu.memory_space<vmem>>, %arg5: memref<1x4xf32, #tpu.memory_space<vmem>>, %arg6: memref<8x4xf32, #tpu.memory_space<vmem>>) attributes {dimension_semantics = [#tpu.dimension_semantics<parallel>], iteration_bounds = array<i64: 1>, scalar_prefetch = 0 : i64, scratch_operands = 0 : i64, tpu.core_type = #tpu.core_type<tc>, window_params = [{transform_indices = @transform_0, window_bounds = array<i64: 8, 16>}, {pipeline_mode = #tpu.pipeline_mode<synchronous>, transform_indices = @transform_1, window_bounds = array<i64: 16, 32>}, {pipeline_mode = #tpu.pipeline_mode<synchronous>, transform_indices = @transform_2, window_bounds = array<i64: 1, 32>}, {pipeline_mode = #tpu.pipeline_mode<synchronous>, transform_indices = @transform_3, window_bounds = array<i64: 32, 4>}, {pipeline_mode = #tpu.pipeline_mode<synchronous>, transform_indices = @transform_4, window_bounds = array<i64: 1, 4>}, {transform_indices = @transform_5, window_bounds = array<i64: 8, 4>}]} {
    %c0 = arith.constant 0 : index
    %c0_0 = arith.constant 0 : index
    %0 = vector.load %arg1[%c0, %c0_0] : memref<8x16xf32, #tpu.memory_space<vmem>>, vector<8x16xf32>
    %1 = arith.truncf %0 : vector<8x16xf32> to vector<8x16xbf16>
    %c0_1 = arith.constant 0 : index
    %c0_2 = arith.constant 0 : index
    %2 = vector.load %arg2[%c0_1, %c0_2] : memref<16x32xbf16, #tpu.memory_space<vmem>>, vector<16x32xbf16>
    %cst = arith.constant dense<0.000000e+00> : vector<8x32xf32>
    %3 = tpu.matmul %1, %2, %cst {dimension_numbers = #tpu.dot_dimension_numbers<[1], [0], [0], [1], [0, 0, 1, 1], [], []>} : vector<8x16xbf16>, vector<16x32xbf16>, vector<8x32xf32> -> vector<8x32xf32>
    %c0_3 = arith.constant 0 : index
    %c0_4 = arith.constant 0 : index
    %4 = vector.load %arg3[%c0_3, %c0_4] : memref<1x32xf32, #tpu.memory_space<vmem>>, vector<1x32xf32>
    %5 = vector.broadcast %4 : vector<1x32xf32> to vector<8x32xf32>
    %6 = arith.addf %3, %5 : vector<8x32xf32>
    %cst_5 = arith.constant 0.000000e+00 : f32
    %7 = vector.broadcast %cst_5 : f32 to vector<8x32xf32>
    %8 = arith.maximumf %6, %7 : vector<8x32xf32>
    %9 = arith.truncf %8 : vector<8x32xf32> to vector<8x32xbf16>
    %c0_6 = arith.constant 0 : index
    %c0_7 = arith.constant 0 : index
    %10 = vector.load %arg4[%c0_6, %c0_7] : memref<32x4xbf16, #tpu.memory_space<vmem>>, vector<32x4xbf16>
    %cst_8 = arith.constant dense<0.000000e+00> : vector<8x4xf32>
    %11 = tpu.matmul %9, %10, %cst_8 {dimension_numbers = #tpu.dot_dimension_numbers<[1], [0], [0], [1], [0, 0, 1, 1], [], []>} : vector<8x32xbf16>, vector<32x4xbf16>, vector<8x4xf32> -> vector<8x4xf32>
    %c0_9 = arith.constant 0 : index
    %c0_10 = arith.constant 0 : index
    %12 = vector.load %arg5[%c0_9, %c0_10] : memref<1x4xf32, #tpu.memory_space<vmem>>, vector<1x4xf32>
    %13 = vector.broadcast %12 : vector<1x4xf32> to vector<8x4xf32>
    %14 = arith.addf %11, %13 : vector<8x4xf32>
    %c0_11 = arith.constant 0 : index
    %c0_12 = arith.constant 0 : index
    %15 = vector.load %arg6[%c0_11, %c0_12] : memref<8x4xf32, #tpu.memory_space<vmem>>, vector<8x4xf32>
    tpu.vector_store %arg6[%c0_11, %c0_12], %14 {strides = array<i32>} : memref<8x4xf32, #tpu.memory_space<vmem>>, vector<8x4xf32>,
    return
  }
  func.func @transform_0(%arg0: i32) -> (i32, i32) {
    %c0_i32 = arith.constant 0 : i32
    %c0_i32_0 = arith.constant 0 : i32
    return %arg0, %c0_i32 : i32, i32
  }
  func.func @transform_1(%arg0: i32) -> (i32, i32) {
    %c0_i32 = arith.constant 0 : i32
    %c0_i32_0 = arith.constant 0 : i32
    %c0_i32_1 = arith.constant 0 : i32
    return %c0_i32, %c0_i32_0 : i32, i32
  }
  func.func @transform_2(%arg0: i32) -> (i32, i32) {
    %c0_i32 = arith.constant 0 : i32
    %c0_i32_0 = arith.constant 0 : i32
    %c0_i32_1 = arith.constant 0 : i32
    return %c0_i32, %c0_i32_0 : i32, i32
  }
  func.func @transform_3(%arg0: i32) -> (i32, i32) {
    %c0_i32 = arith.constant 0 : i32
    %c0_i32_0 = arith.constant 0 : i32
    %c0_i32_1 = arith.constant 0 : i32
    return %c0_i32, %c0_i32_0 : i32, i32
  }
  func.func @transform_4(%arg0: i32) -> (i32, i32) {
    %c0_i32 = arith.constant 0 : i32
    %c0_i32_0 = arith.constant 0 : i32
    %c0_i32_1 = arith.constant 0 : i32
    return %c0_i32, %c0_i32_0 : i32, i32
  }
  func.func @transform_5(%arg0: i32) -> (i32, i32) {
    %c0_i32 = arith.constant 0 : i32
    %c0_i32_0 = arith.constant 0 : i32
    return %arg0, %c0_i32 : i32, i32
  }
}

</mosaic_0001>

<llo_original>
// kernel: tpu_custom_call.1
$region0: #{tpu_custom_call.1}
  #allocation0 [shape = 'u32[]', space=smem, size = 0x4, offset = 0x4, fixed_abs, tag = 'smem constant byte address 0x4 - core index']
  #allocation1 [shape = 'u32[72,128]{1,0:T(1,128)}', space=vmem, size = 0x9000, scoped, tag = 'internal scratch']
  %s0 = inlined_call_operand.vmem [shape: f32[8,16], index: 0, kind: input, shape index: {}]
  %s1 = inlined_call_operand.vmem [shape: bf16[16,32], index: 1, kind: input, shape index: {}]
  %s2 = inlined_call_operand.vmem [shape: f32[1,32], index: 2, kind: input, shape index: {}]
  %s3 = inlined_call_operand.vmem [shape: bf16[32,4], index: 3, kind: input, shape index: {}]
  %s4 = inlined_call_operand.vmem [shape: f32[1,4], index: 4, kind: input, shape index: {}]
  %s5 = inlined_call_operand.vmem [shape: f32[8,4], index: 5, kind: output, shape index: {}]
  %s6 = sld [smem:[#allocation0]]
  $region30: #{tpu_custom_call.1} parent=0
    _
  %s8 = ssub.s32 1, %s6
  %s9 = scalar_select 0, %s8, %s6
  // Predicated region
  $region2: #{tpu_custom_call.1} parent=0 // pred_check
    _
  $region3: #{tpu_custom_call.1} parent=0 // pred_check_branch
    %11 = sbr.rel (0) target = $region5
  $region4: #{tpu_custom_call.1} parent=0 // pred_region
    _
  $region5: #{tpu_custom_call.1} parent=0 // pred_fallthru
    _
  // Predicated region
  $region6: #{tpu_custom_call.1} parent=0 // pred_check
    _
  $region7: #{tpu_custom_call.1} parent=0 // pred_check_branch
    %13 = sbr.rel (0) target = $region9
  $region8: #{tpu_custom_call.1} parent=0 // pred_region
    _
  $region9: #{tpu_custom_call.1} parent=0 // pred_fallthru
    _
  // Predicated region
  $region10: #{tpu_custom_call.1} parent=0 // pred_check
    _
  $region11: #{tpu_custom_call.1} parent=0 // pred_check_branch
    %15 = sbr.rel (0) target = $region13
  $region12: #{tpu_custom_call.1} parent=0 // pred_region
    _
  $region13: #{tpu_custom_call.1} parent=0 // pred_fallthru
    _
  // Predicated region
  $region14: #{tpu_custom_call.1} parent=0 // pred_check
    _
  $region15: #{tpu_custom_call.1} parent=0 // pred_check_branch
    %17 = sbr.rel (0) target = $region17
  $region16: #{tpu_custom_call.1} parent=0 // pred_region
    _
  $region17: #{tpu_custom_call.1} parent=0 // pred_fallthru
    _
  // Predicated region
  $region18: #{tpu_custom_call.1} parent=0 // pred_check
    _
  $region19: #{tpu_custom_call.1} parent=0 // pred_check_branch
    %19 = sbr.rel (0) target = $region21
  $region20: #{tpu_custom_call.1} parent=0 // pred_region
    _
  $region21: #{tpu_custom_call.1} parent=0 // pred_fallthru
    _
  %v21 = vld [vmem:[%s0] sm:$0xff]
  %v22 = vpack.c.bf16 %v21, %v21
  %v23 = vld [vmem:[%s1] sm:$0xf]
  %v24 = vld [vmem:[%s1 + $0x4] sm:$0xf]
  %v25 = vld [vmem:[%s2] sm:$0x1]
  %v27 = vperm.slane %v25, 0
  %v31 = vunpack.c.l.b16 %v23
  %v32 = vunpack.c.l.b16 %v24
  %v33 = vpack.c.b16 %v32, %v31
  %vm35 = vcmask 130048
  %v37 = vsel %vm35, %v22, 0
  %39 = vmatpush.bf16.msra.mxu0 0
  %40 = vmatpush.bf16.msra.mxu0 0
  %41 = vmatpush.bf16.msra.mxu0 0
  %42 = vmatpush.bf16.msra.mxu0 0
  %43 = vmatpush.bf16.msra.mxu0 0
  %44 = vmatpush.bf16.msra.mxu0 0
  %45 = vmatpush.bf16.msra.mxu0 0
  %46 = vmatpush.bf16.msra.mxu0 %v33
  %47 = vmatmul.bf16.gmra.mxu0 %v37
  %v48 = vpop.f32.mrf.mxu0
  %v49 = vadd.f32 %v27, %v48
  %v50 = vpop.f32.mrf.mxu0
  %51 = vdwg.mxu0
  %v52 = vmax.f32 %v49, 0.0
  %v53 = vpack.c.bf16 %v52, %v52
  %v54 = vld [vmem:[%s3] sm:$0xf]
  %v55 = vld [vmem:[%s3 + $0x4] sm:$0xf]
  %v56 = vld [vmem:[%s3 + $0x8] sm:$0xf]
  %v57 = vld [vmem:[%s3 + $0xc] sm:$0xf]
  %v58 = vld [vmem:[%s4] sm:$0x1]
  %v60 = vperm.slane %v58, 0
  %v66 = vunpack.c.l.b16 %v54
  %v67 = vunpack.c.l.b16 %v55
  %v68 = vunpack.c.l.b16 %v56
  %v69 = vunpack.c.l.b16 %v57
  %v70 = vpack.c.b16 %v67, %v66
  %v71 = vpack.c.b16 %v69, %v68
  %vm74 = vcmask 261120
  %v76 = vsel %vm74, %v53, 0
  %78 = vmatpush.bf16.msra.mxu0 0
  %79 = vmatpush.bf16.msra.mxu0 0
  %80 = vmatpush.bf16.msra.mxu0 0
  %81 = vmatpush.bf16.msra.mxu0 0
  %82 = vmatpush.bf16.msra.mxu0 0
  %83 = vmatpush.bf16.msra.mxu0 0
  %84 = vmatpush.bf16.msra.mxu0 %v71
  %85 = vmatpush.bf16.msra.mxu0 %v70
  %86 = vmatmul.bf16.gmra.mxu0 %v76
  %v87 = vpop.f32.mrf.mxu0
  %v88 = vadd.f32 %v60, %v87
  %v89 = vpop.f32.mrf.mxu0
  %90 = vdwg.mxu0
  %vm91 = vcmask 31744
  %92 = vst.msk [vmem:[%s5] sm:$0xff] %vm91, %v88
  // Predicated region
  $region22: #{tpu_custom_call.1} parent=0 // pred_check
    _
  $region23: #{tpu_custom_call.1} parent=0 // pred_check_branch
    %94 = sbr.rel (0) target = $region25
  $region24: #{tpu_custom_call.1} parent=0 // pred_region
    _
  $region25: #{tpu_custom_call.1} parent=0 // pred_fallthru
    _
  // Predicated region
  $region26: #{tpu_custom_call.1} parent=0 // pred_check
    _
  $region27: #{tpu_custom_call.1} parent=0 // pred_check_branch
    %96 = sbr.rel (0) target = $region29
  $region28: #{tpu_custom_call.1} parent=0 // pred_region
    _
  $region29: #{tpu_custom_call.1} parent=0 // pred_fallthru
    _

</llo_original>
